<compile_context>
chip_gen: v7x
topology: tpu7x:2x2x1
jax: 0.10.0
libtpu: 0.0.40
codegen_flags: <defaults>
</compile_context>

<pallas_src>
import functools

import jax
import jax.numpy as jnp
from jax import lax
from jax.experimental import pallas as pl
from jax.experimental.pallas import tpu as pltpu


def _local_aggregator_kernel(h_ref, adj_ref, a_ref, out_ref, *, slope, n_valid):
    # h_ref:  (TB, Np, D) bf16   adj_ref: (TB, Np, Np) int32
    # a_ref:  (4, D)      bf16   out_ref: (TB, Np, D)
    h_bf = h_ref[...]                                    # (TB, Np, D) bf16
    adj = adj_ref[...]                                   # (TB, Np, Np) int32
    a_bf = a_ref[...]                                    # (4, D) bf16

    TB, Np, D = h_bf.shape

    # Stack the four edge-type "queries" into one LHS, directly in bf16:
    #   lhs[b, k*Np + i, :] = h[b, i, :] * a[k, :]
    lhs = (h_bf[:, None, :, :] * a_bf[None, :, None, :]).reshape(TB, 4 * Np, D)

    # One fused, batched MXU contraction over the feature dim (no transpose):
    #   e_st[b, k*Np + i, j] = sum_d lhs[b, k*Np + i, d] * h[b, j, d]
    e_st = lax.dot_general(
        lhs, h_bf,
        dimension_numbers=(((2,), (2,)), ((0,), (0,))),
        preferred_element_type=jnp.float32)              # (TB, 4Np, Np) f32

    # Edge-type select FIRST (one (TB,Np,Np) tile live), LeakyReLU after.
    sel = jnp.zeros((TB, Np, Np), jnp.float32)
    for k in range(4):
        sel = jnp.where(adj == (k + 1), e_st[:, k * Np:(k + 1) * Np, :], sel)
    sel = jnp.where(sel > 0, sel, slope * sel)           # LeakyReLU (selected only)

    # Mask applied AFTER the activation; masked entries never see `slope`.
    valid = (adj >= 1) & (adj <= 4)
    alpha = jnp.where(valid, sel, jnp.float32(-9e15))    # f32: no bf16 overflow

    # Row softmax. If N was padded to Np, exclude padded columns after exp so
    # fully-masked rows stay uniform over the REAL N columns (torch parity).
    m = jnp.max(alpha, axis=-1, keepdims=True)
    p = jnp.exp(alpha - m)
    if Np != n_valid:
        col = lax.broadcasted_iota(jnp.int32, (1, 1, Np), 2)
        p = jnp.where(col < n_valid, p, 0.0)
    s = jnp.sum(p, axis=-1, keepdims=True)
    alpha = p * pl.reciprocal(s, approx=True)            # EUP slot, ~free

    # output = alpha @ h  (batched bf16 MXU, f32 accumulate)
    out = lax.dot_general(
        alpha.astype(jnp.bfloat16), h_bf,
        dimension_numbers=(((2,), (1,)), ((0,), (0,))),
        preferred_element_type=jnp.float32)              # (TB, Np, D)
    out_ref[...] = out.astype(out_ref.dtype)


def _choose_block_b(B, Np, D, out_itemsize):
    """Sessions per grid step, sized against a ~24 MiB VMEM budget (safe on
    v7x's 64 MiB per-TC VMEM; v5e/v6e have 128 MiB)."""
    Dl = 128 * pl.cdiv(D, 128)          # lane-padded VMEM occupancy
    Nl = 128 * pl.cdiv(Np, 128)
    per = (2 * 2 * Np * Dl * 2          # h bf16 block, double-buffered
           + 2 * Np * Nl * 4            # adj int32 block, double-buffered
           + 2 * Np * Dl * out_itemsize # out block, double-buffered
           + 4 * Np * Dl * 2            # stacked bf16 LHS
           + 4 * Np * Nl * 4            # (4N, N) f32 scores
           + 4 * Np * Nl * 4)           # select / mask / softmax temporaries
    budget = 24 * 1024 * 1024
    tb = max(1, min(B, budget // max(per, 1)))
    if B >= 2:
        # keep the grid even and >= 2 steps (v7x: 2 TCs on the parallel axis)
        steps = max(2, pl.cdiv(B, tb))
        if steps % 2:
            steps += 1
        tb = max(1, pl.cdiv(B, steps))
    return tb


def local_aggregator(hidden, adj, a_params, *, leaky_alpha, block_b=None):
    """hidden: (B, N, D), adj: (B, N, N) int, a_params: (4, D)."""
    B, N, D = hidden.shape
    Np = 8 * pl.cdiv(N, 8)              # sublane-aligned node dim
    out_dtype = hidden.dtype
    out_itemsize = jnp.dtype(out_dtype).itemsize

    # bf16 MXU operands (the cast is expected to fuse with the upstream
    # producer of `hidden`; pass bf16 directly to skip it entirely).
    h_in = hidden.astype(jnp.bfloat16)
    a_in = a_params.astype(jnp.bfloat16)
    adj_in = adj.astype(jnp.int32)
    # TODO(synk): for very large session graphs (N >= ~512) ship adj as int8
    # to cut its N^2 HBM traffic; at typical session N it only costs relayouts.

    if Np != N:
        # Pad node dim so the (TB,4,N,D)->(TB,4N,D) reshape and the k*N score
        # slices stay (8,128)-tile aligned. adj pads with 0 -> masked columns.
        h_in = jnp.pad(h_in, ((0, 0), (0, Np - N), (0, 0)))
        adj_in = jnp.pad(adj_in, ((0, 0), (0, Np - N), (0, Np - N)))

    if block_b is None:
        block_b = _choose_block_b(B, Np, D, out_itemsize)
    grid = (pl.cdiv(B, block_b),)       # batch remainder -> partial last block

    kernel = functools.partial(_local_aggregator_kernel,
                               slope=leaky_alpha, n_valid=N)
    out = pl.pallas_call(
        kernel,
        out_shape=jax.ShapeDtypeStruct((B, Np, D), out_dtype),
        grid_spec=pltpu.PrefetchScalarGridSpec(
            num_scalar_prefetch=0,
            grid=grid,
            in_specs=[
                pl.BlockSpec((block_b, Np, D), lambda b: (b, 0, 0)),
                pl.BlockSpec((block_b, Np, Np), lambda b: (b, 0, 0)),
                pl.BlockSpec((4, D), lambda b: (0, 0)),
            ],
            out_specs=pl.BlockSpec((block_b, Np, D), lambda b: (b, 0, 0)),
        ),
        compiler_params=pltpu.CompilerParams(
            dimension_semantics=("parallel",),
            vmem_limit_bytes=48 * 1024 * 1024),
        cost_estimate=pl.CostEstimate(
            flops=10 * B * Np * Np * D,            # (4N,N,D) + (N,N,D) matmuls
            transcendentals=B * Np * Np,           # exp
            bytes_accessed=(B * Np * D * 2         # h bf16 read
                            + B * Np * Np * 4     # adj int32 read
                            + 4 * D * 2           # a params
                            + B * Np * D * out_itemsize)),  # out write
    )(h_in, adj_in, a_in)

    if Np != N:
        out = out[:, :N, :]
    return out


def local_aggregator_ref(hidden, adj, a_params, *, leaky_alpha,
                         matmul_dtype=jnp.float32):
    """Pure-JAX reference mirroring the PyTorch forward.

    matmul_dtype lets the reference mirror the kernel's bf16 MXU operands;
    accumulation, masking and softmax stay in f32 either way.
    """
    h = hidden.astype(matmul_dtype)
    a = a_params.astype(matmul_dtype)
    hk = h[:, None, :, :] * a[None, :, None, :]                     # (B,4,N,D)
    e = jnp.einsum("bkid,bjd->kbij", hk, h,
                   preferred_element_type=jnp.float32)              # (4,B,N,N)
    e = jnp.where(e > 0, e, leaky_alpha * e)
    neg = jnp.full(e.shape[1:], -9e15, dtype=jnp.float32)
    alpha = jnp.where(adj == 1, e[0], neg)
    alpha = jnp.where(adj == 2, e[1], alpha)
    alpha = jnp.where(adj == 3, e[2], alpha)
    alpha = jnp.where(adj == 4, e[3], alpha)
    m = jnp.max(alpha, axis=-1, keepdims=True)
    p = jnp.exp(alpha - m)
    alpha = p / jnp.sum(p, axis=-1, keepdims=True)
    out = jnp.einsum("bij,bjd->bid", alpha.astype(matmul_dtype), h,
                     preferred_element_type=jnp.float32)
    return out.astype(hidden.dtype)


if __name__ == "__main__":
    B, N, D = 2, 8, 32
    leaky_alpha = 0.2

    key = jax.random.PRNGKey(0)
    k_h, k_a, k_adj = jax.random.split(key, 3)

    hidden = jax.random.normal(k_h, (B, N, D), dtype=jnp.float32)
    # Deterministic parameter init (a_0..a_3 stacked); bias/dropout are unused
    # in the PyTorch forward pass.
    a_params = jax.random.normal(k_a, (4, D), dtype=jnp.float32) * (1.0 / D ** 0.5)
    adj = jax.random.randint(k_adj, (B, N, N), 0, 5, dtype=jnp.int32)

    out = local_aggregator(hidden, adj, a_params, leaky_alpha=leaky_alpha)
    out = jax.block_until_ready(out)
    assert out.shape == (B, N, D)

    # Numerics-matched reference (bf16 MXU operands, f32 acc/mask/softmax).
    ref_bf16 = local_aggregator_ref(hidden, adj, a_params,
                                    leaky_alpha=leaky_alpha,
                                    matmul_dtype=jnp.bfloat16)
    assert jnp.allclose(out, ref_bf16, atol=5e-3, rtol=5e-3), \
        "mismatch vs bf16-matched reference"

    # Sanity vs pure-f32 reference (looser: kernel matmuls run in bf16).
    ref_f32 = local_aggregator_ref(hidden, adj, a_params,
                                   leaky_alpha=leaky_alpha)
    assert jnp.allclose(out, ref_f32, atol=1e-1, rtol=1e-1), \
        "mismatch vs f32 reference"

    print("KERNEL_OK")
</pallas_src>

<mosaic_0001>
module attributes {stable_mosaic.version = 11 : i64} {
  func.func @_local_aggregator_kernel(%arg0: i32, %arg1: memref<1x8x32xbf16, #tpu.memory_space<vmem>>, %arg2: memref<1x8x8xi32, #tpu.memory_space<vmem>>, %arg3: memref<4x32xbf16, #tpu.memory_space<vmem>>, %arg4: memref<1x8x32xf32, #tpu.memory_space<vmem>>) attributes {dimension_semantics = [#tpu.dimension_semantics<parallel>], iteration_bounds = array<i64: 2>, scalar_prefetch = 0 : i64, scratch_operands = 0 : i64, tpu.core_type = #tpu.core_type<tc>, window_params = [{transform_indices = @transform_0, window_bounds = array<i64: 1, 8, 32>}, {transform_indices = @transform_1, window_bounds = array<i64: 1, 8, 8>}, {pipeline_mode = #tpu.pipeline_mode<synchronous>, transform_indices = @transform_2, window_bounds = array<i64: 4, 32>}, {transform_indices = @transform_3, window_bounds = array<i64: 1, 8, 32>}]} {
    %c0 = arith.constant 0 : index
    %c0_0 = arith.constant 0 : index
    %c0_1 = arith.constant 0 : index
    %0 = vector.load %arg1[%c0, %c0_0, %c0_1] : memref<1x8x32xbf16, #tpu.memory_space<vmem>>, vector<1x8x32xbf16>
    %c0_2 = arith.constant 0 : index
    %c0_3 = arith.constant 0 : index
    %c0_4 = arith.constant 0 : index
    %1 = vector.load %arg2[%c0_2, %c0_3, %c0_4] : memref<1x8x8xi32, #tpu.memory_space<vmem>>, vector<1x8x8xi32>
    %c0_5 = arith.constant 0 : index
    %c0_6 = arith.constant 0 : index
    %2 = vector.load %arg3[%c0_5, %c0_6] : memref<4x32xbf16, #tpu.memory_space<vmem>>, vector<4x32xbf16>
    %3 = vector.shape_cast %0 : vector<1x8x32xbf16> to vector<1x1x8x32xbf16>
    %4 = vector.shape_cast %2 : vector<4x32xbf16> to vector<1x4x1x32xbf16>
    %5 = vector.broadcast %3 : vector<1x1x8x32xbf16> to vector<1x4x8x32xbf16>
    %6 = vector.broadcast %4 : vector<1x4x1x32xbf16> to vector<1x4x8x32xbf16>
    %7 = arith.mulf %5, %6 : vector<1x4x8x32xbf16>
    %8 = vector.shape_cast %7 : vector<1x4x8x32xbf16> to vector<1x32x32xbf16>
    %cst = arith.constant dense<0.000000e+00> : vector<1x32x8xf32>
    %9 = tpu.matmul %8, %0, %cst {dimension_numbers = #tpu.dot_dimension_numbers<[2], [2], [1], [1], [0, 0, 0, 1, 1, 1], [0], [0]>} : vector<1x32x32xbf16>, vector<1x8x32xbf16>, vector<1x32x8xf32> -> vector<1x32x8xf32>
    %cst_7 = arith.constant 0.000000e+00 : f32
    %10 = vector.broadcast %cst_7 : f32 to vector<1x8x8xf32>
    %c1_i32 = arith.constant 1 : i32
    %11 = vector.broadcast %c1_i32 : i32 to vector<1x8x8xi32>
    %12 = arith.cmpi eq, %1, %11 : vector<1x8x8xi32>
    %13 = vector.extract_strided_slice %9 {offsets = [0, 0, 0], sizes = [1, 8, 8], strides = [1, 1, 1]} : vector<1x32x8xf32> to vector<1x8x8xf32>
    %14 = arith.select %12, %13, %10 : vector<1x8x8xi1>, vector<1x8x8xf32>
    %c2_i32 = arith.constant 2 : i32
    %15 = vector.broadcast %c2_i32 : i32 to vector<1x8x8xi32>
    %16 = arith.cmpi eq, %1, %15 : vector<1x8x8xi32>
    %17 = vector.extract_strided_slice %9 {offsets = [0, 8, 0], sizes = [1, 8, 8], strides = [1, 1, 1]} : vector<1x32x8xf32> to vector<1x8x8xf32>
    %18 = arith.select %16, %17, %14 : vector<1x8x8xi1>, vector<1x8x8xf32>
    %c3_i32 = arith.constant 3 : i32
    %19 = vector.broadcast %c3_i32 : i32 to vector<1x8x8xi32>
    %20 = arith.cmpi eq, %1, %19 : vector<1x8x8xi32>
    %21 = vector.extract_strided_slice %9 {offsets = [0, 16, 0], sizes = [1, 8, 8], strides = [1, 1, 1]} : vector<1x32x8xf32> to vector<1x8x8xf32>
    %22 = arith.select %20, %21, %18 : vector<1x8x8xi1>, vector<1x8x8xf32>
    %c4_i32 = arith.constant 4 : i32
    %23 = vector.broadcast %c4_i32 : i32 to vector<1x8x8xi32>
    %24 = arith.cmpi eq, %1, %23 : vector<1x8x8xi32>
    %25 = vector.extract_strided_slice %9 {offsets = [0, 24, 0], sizes = [1, 8, 8], strides = [1, 1, 1]} : vector<1x32x8xf32> to vector<1x8x8xf32>
    %26 = arith.select %24, %25, %22 : vector<1x8x8xi1>, vector<1x8x8xf32>
    %cst_8 = arith.constant 0.000000e+00 : f32
    %27 = vector.broadcast %cst_8 : f32 to vector<1x8x8xf32>
    %28 = arith.cmpf ogt, %26, %27 : vector<1x8x8xf32>
    %cst_9 = arith.constant 2.000000e-01 : f32
    %29 = vector.broadcast %cst_9 : f32 to vector<1x8x8xf32>
    %30 = arith.mulf %29, %26 : vector<1x8x8xf32>
    %31 = arith.select %28, %26, %30 : vector<1x8x8xi1>, vector<1x8x8xf32>
    %c1_i32_10 = arith.constant 1 : i32
    %32 = vector.broadcast %c1_i32_10 : i32 to vector<1x8x8xi32>
    %33 = arith.cmpi sge, %1, %32 : vector<1x8x8xi32>
    %c4_i32_11 = arith.constant 4 : i32
    %34 = vector.broadcast %c4_i32_11 : i32 to vector<1x8x8xi32>
    %35 = arith.cmpi sle, %1, %34 : vector<1x8x8xi32>
    %36 = arith.andi %33, %35 : vector<1x8x8xi1>
    %cst_12 = arith.constant -9.000000e+15 : f32
    %37 = vector.broadcast %cst_12 : f32 to vector<1x8x8xf32>
    %38 = arith.select %36, %31, %37 : vector<1x8x8xi1>, vector<1x8x8xf32>
    %cst_13 = arith.constant dense<0xFF800000> : vector<1x8xf32>
    %39 = vector.multi_reduction <maximumf>, %38, %cst_13 [2] : vector<1x8x8xf32> to vector<1x8xf32>
    %40 = vector.shape_cast %39 : vector<1x8xf32> to vector<1x8x1xf32>
    %41 = vector.broadcast %40 : vector<1x8x1xf32> to vector<1x8x8xf32>
    %42 = arith.subf %38, %41 : vector<1x8x8xf32>
    %43 = math.exp %42 : vector<1x8x8xf32>
    %cst_14 = arith.constant dense<0.000000e+00> : vector<1x8xf32>
    %44 = vector.multi_reduction <add>, %43, %cst_14 [2] : vector<1x8x8xf32> to vector<1x8xf32>
    %45 = vector.shape_cast %44 : vector<1x8xf32> to vector<1x8x1xf32>
    %46 = tpu.reciprocal %45 {approx = true} : vector<1x8x1xf32> -> vector<1x8x1xf32>
    %47 = vector.broadcast %46 : vector<1x8x1xf32> to vector<1x8x8xf32>
    %48 = arith.mulf %43, %47 : vector<1x8x8xf32>
    %49 = arith.truncf %48 : vector<1x8x8xf32> to vector<1x8x8xbf16>
    %cst_15 = arith.constant dense<0.000000e+00> : vector<1x8x32xf32>
    %50 = tpu.matmul %49, %0, %cst_15 {dimension_numbers = #tpu.dot_dimension_numbers<[2], [1], [1], [2], [0, 0, 0, 1, 1, 2], [0], [0]>} : vector<1x8x8xbf16>, vector<1x8x32xbf16>, vector<1x8x32xf32> -> vector<1x8x32xf32>
    %c0_16 = arith.constant 0 : index
    %c0_17 = arith.constant 0 : index
    %c0_18 = arith.constant 0 : index
    %51 = vector.load %arg4[%c0_16, %c0_17, %c0_18] : memref<1x8x32xf32, #tpu.memory_space<vmem>>, vector<1x8x32xf32>
    tpu.vector_store %arg4[%c0_16, %c0_17, %c0_18], %50 {strides = array<i32>} : memref<1x8x32xf32, #tpu.memory_space<vmem>>, vector<1x8x32xf32>,
    return
  }
  func.func @transform_0(%arg0: i32) -> (i32, i32, i32) {
    %c0_i32 = arith.constant 0 : i32
    %c0_i32_0 = arith.constant 0 : i32
    %c0_i32_1 = arith.constant 0 : i32
    return %arg0, %c0_i32, %c0_i32_0 : i32, i32, i32
  }
  func.func @transform_1(%arg0: i32) -> (i32, i32, i32) {
    %c0_i32 = arith.constant 0 : i32
    %c0_i32_0 = arith.constant 0 : i32
    %c0_i32_1 = arith.constant 0 : i32
    return %arg0, %c0_i32, %c0_i32_0 : i32, i32, i32
  }
  func.func @transform_2(%arg0: i32) -> (i32, i32) {
    %c0_i32 = arith.constant 0 : i32
    %c0_i32_0 = arith.constant 0 : i32
    %c0_i32_1 = arith.constant 0 : i32
    return %c0_i32, %c0_i32_0 : i32, i32
  }
  func.func @transform_3(%arg0: i32) -> (i32, i32, i32) {
    %c0_i32 = arith.constant 0 : i32
    %c0_i32_0 = arith.constant 0 : i32
    %c0_i32_1 = arith.constant 0 : i32
    return %arg0, %c0_i32, %c0_i32_0 : i32, i32, i32
  }
}

</mosaic_0001>

<llo_original>
// kernel: tpu_custom_call.1
$region0: #{tpu_custom_call.1}
  #allocation0 [shape = 'u32[]', space=smem, size = 0x4, offset = 0x4, fixed_abs, tag = 'smem constant byte address 0x4 - core index']
  #allocation1 [shape = 'u32[144,128]{1,0:T(1,128)}', space=vmem, size = 0x12000, scoped, tag = 'internal scratch']
  %s0 = inlined_call_operand.hbm [shape: bf16[2,8,32], index: 0, kind: input, shape index: {}]
  %s1 = inlined_call_operand.hbm [shape: s32[2,8,8], index: 1, kind: input, shape index: {}]
  %s2 = inlined_call_operand.vmem [shape: bf16[4,32], index: 2, kind: input, shape index: {}]
  %s3 = inlined_call_operand.hbm [shape: f32[2,8,32], index: 3, kind: output, shape index: {}]
  %s4 = sld [smem:[#allocation0]]
  $region53: #{tpu_custom_call.1} parent=0
    _
  %s6 = ssub.s32 1, %s4
  %s7 = scalar_select 0, %s6, %s4
  $region1: #{tpu_custom_call.1} parent=0
    #allocation2 [shape = 'u8[4096]{0}', space=vmem, size = 0x1000, scoped, tag = 'input window, operand 0']
    #allocation3 [shape = 's32[2]{0}', space=sflag, size = 0x8, scoped, tag = 'scoped memory for tpu_custom_call.1']
    #allocation4 [shape = 's32[2]{0}', space=sflag, size = 0x8, scoped, tag = 'scoped memory for tpu_custom_call.1']
    #allocation5 [shape = 'u8[8192]{0}', space=vmem, size = 0x2000, scoped, tag = 'input window, operand 1']
    #allocation6 [shape = 's32[2]{0}', space=sflag, size = 0x8, scoped, tag = 'scoped memory for tpu_custom_call.1']
    #allocation7 [shape = 'u8[8192]{0}', space=vmem, size = 0x2000, scoped, tag = 'output window, operand 0']
    %8 = vsyncpa [#allocation3], 0
    %s9 = scalar_lea.sflag [#allocation3], 1
    %10 = vsyncpa %s9, 0
    %11 = vsyncpa [#allocation6], 0
    %s12 = scalar_lea.sflag [#allocation6], 1
    %13 = vsyncpa %s12, 0
    %14 = vsyncpa [#allocation4], 0
    %s15 = scalar_lea.sflag [#allocation4], 1
    %16 = vsyncpa %s15, 0
    loop: start=0, step=1, limit=4
    $region2: #{tpu_custom_call.1} parent=1 // loop_pre_header
      _
    $region3: #{tpu_custom_call.1} parent=1 // loop_header
      %s18 = sphi 0, %s22
      %p19 = scmp.ge.s32.totalorder %s18, 4
      %s28 = sphi 0, %s30
      %s31 = sphi 0, %s28
      %s32 = sphi 0, %s31
      %s48 = sphi 0, %s32
      %s54 = sphi 0, %s56
      %s57 = sphi 0, %s54
      %s58 = sphi 0, %s57
      %s74 = sphi 0, %s58
      %s78 = sphi 0, %s78
      %s80 = sphi 0, %s78
      %s81 = sphi 0, %s80
      %s95 = sphi 0, %s81
      %s101 = sphi 0, %s103
      %s104 = sphi 0, %s101
      %s105 = sphi 0, %s104
      %s121 = sphi 0, %s105
    $region4: #{tpu_custom_call.1} parent=1 // loop_header_branch
      %21 = sbr.rel (%p19) target = $region8
    $region5: #{tpu_custom_call.1} parent=1 // loop_body
      %s23 = ssub.s32 %s18, 1
      %s24 = ssub.s32 %s18, 2
      %s25 = sadd.s32 %s18, 1
      %s26 = ssub.s32 %s18, %s25
      %p27 = scmp.eq.s32.totalorder %s26, 0
      %s29 = sadd.s32 %s28, 1
      %s30 = scalar_select %p27, %s28, %s29
      %p33 = pneg %p27
      %p34 = scmp.eq.s32.totalorder %s18, 1
      %p35 = por %p33, %p34
      %p36 = scmp.ne.s32.totalorder %s28, %s31
      %p37 = scmp.eq.s32.totalorder %s18, 0
      %p38 = por %p36, %p37
      %p39 = scmp.ne.s32.totalorder %s28, %s31
      %p40 = scmp.eq.s32.totalorder %s23, 1
      %p41 = por %p39, %p40
      %p42 = scmp.ne.s32.totalorder %s31, %s32
      %p43 = scmp.eq.s32.totalorder %s23, 0
      %p44 = por %p42, %p43
      %p45 = scmp.ne.s32.totalorder %s31, %s32
      %p46 = scmp.eq.s32.totalorder %s24, 1
      %p47 = por %p45, %p46
      %p49 = scmp.ne.s32.totalorder %s32, %s48
      %p50 = scmp.eq.s32.totalorder %s24, 0
      %p51 = por %p49, %p50
      %s52 = ssub.s32 %s18, %s25
      %p53 = scmp.eq.s32.totalorder %s52, 0
      %s55 = sadd.s32 %s54, 1
      %s56 = scalar_select %p53, %s54, %s55
      %p59 = pneg %p53
      %p60 = scmp.eq.s32.totalorder %s18, 1
      %p61 = por %p59, %p60
      %p62 = scmp.ne.s32.totalorder %s54, %s57
      %p63 = scmp.eq.s32.totalorder %s18, 0
      %p64 = por %p62, %p63
      %p65 = scmp.ne.s32.totalorder %s54, %s57
      %p66 = scmp.eq.s32.totalorder %s23, 1
      %p67 = por %p65, %p66
      %p68 = scmp.ne.s32.totalorder %s57, %s58
      %p69 = scmp.eq.s32.totalorder %s23, 0
      %p70 = por %p68, %p69
      %p71 = scmp.ne.s32.totalorder %s57, %s58
      %p72 = scmp.eq.s32.totalorder %s24, 1
      %p73 = por %p71, %p72
      %p75 = scmp.ne.s32.totalorder %s58, %s74
      %p76 = scmp.eq.s32.totalorder %s24, 0
      %p77 = por %p75, %p76
      %s79 = sadd.s32 %s78, 1
      %p82 = scmp.eq.s32.totalorder %s18, 1
      %p83 = scmp.ne.s32.totalorder %s78, %s80
      %p84 = scmp.eq.s32.totalorder %s18, 0
      %p85 = por %p83, %p84
      %p86 = scmp.ne.s32.totalorder %s78, %s80
      %p87 = scmp.eq.s32.totalorder %s23, 1
      %p88 = por %p86, %p87
      %p89 = scmp.ne.s32.totalorder %s80, %s81
      %p90 = scmp.eq.s32.totalorder %s23, 0
      %p91 = por %p89, %p90
      %p92 = scmp.ne.s32.totalorder %s80, %s81
      %p93 = scmp.eq.s32.totalorder %s24, 1
      %p94 = por %p92, %p93
      %p96 = scmp.ne.s32.totalorder %s81, %s95
      %p97 = scmp.eq.s32.totalorder %s24, 0
      %p98 = por %p96, %p97
      %s99 = ssub.s32 %s18, %s25
      %p100 = scmp.eq.s32.totalorder %s99, 0
      %s102 = sadd.s32 %s101, 1
      %s103 = scalar_select %p100, %s101, %s102
      %p106 = pneg %p100
      %p107 = scmp.eq.s32.totalorder %s18, 1
      %p108 = por %p106, %p107
      %p109 = scmp.ne.s32.totalorder %s101, %s104
      %p110 = scmp.eq.s32.totalorder %s18, 0
      %p111 = por %p109, %p110
      %p112 = scmp.ne.s32.totalorder %s101, %s104
      %p113 = scmp.eq.s32.totalorder %s23, 1
      %p114 = por %p112, %p113
      %p115 = scmp.ne.s32.totalorder %s104, %s105
      %p116 = scmp.eq.s32.totalorder %s23, 0
      %p117 = por %p115, %p116
      %p118 = scmp.ne.s32.totalorder %s104, %s105
      %p119 = scmp.eq.s32.totalorder %s24, 1
      %p120 = por %p118, %p119
      %p122 = scmp.ne.s32.totalorder %s105, %s121
      %p123 = scmp.eq.s32.totalorder %s24, 0
      %p124 = por %p122, %p123
      %p125 = scmp.le.s32.totalorder 1, %s18
      %p126 = scmp.lt.s32.totalorder %s18, 3
      %p127 = pnand %p125, %p126
      %p128 = pneg %p127
      // Predicated region
      $region9: #{tpu_custom_call.1} parent=5 // pred_check
        _
      $region10: #{tpu_custom_call.1} parent=5 // pred_check_branch
        %130 = sbr.rel (%p127) target = $region12
      $region11: #{tpu_custom_call.1} parent=5 // pred_region
        %s131 = ssub.s32 %s18, 1
        // Predicated region
        $region13: #{tpu_custom_call.1} parent=11 // pred_check
          %p132 = pneg %p91
        $region14: #{tpu_custom_call.1} parent=11 // pred_check_branch
          %134 = sbr.rel (%p132) target = $region16
        $region15: #{tpu_custom_call.1} parent=11 // pred_region
          _
        $region16: #{tpu_custom_call.1} parent=11 // pred_fallthru
          _
      $region12: #{tpu_custom_call.1} parent=5 // pred_fallthru
        _
      %p135 = scmp.lt.s32.totalorder %s18, 2
      // Predicated region
      $region17: #{tpu_custom_call.1} parent=5 // pred_check
        %p136 = pneg %p135
      $region18: #{tpu_custom_call.1} parent=5 // pred_check_branch
        %138 = sbr.rel (%p136) target = $region20
      $region19: #{tpu_custom_call.1} parent=5 // pred_region
        // Predicated region
        $region21: #{tpu_custom_call.1} parent=19 // pred_check
          %p139 = pneg %p38
        $region22: #{tpu_custom_call.1} parent=19 // pred_check_branch
          %141 = sbr.rel (%p139) target = $region24
        $region23: #{tpu_custom_call.1} parent=19 // pred_region
          %s142 = sand.u32 %s28, 1
          %s143 = scalar_lea.sflag [#allocation3], %s142
          %s144 = sand.u32 %s28, 1
          %s145 = smul.addr %s144, 4
          %s146 = scalar_lea.vmem [#allocation2], %s145
          %s148 = ssub.s32 64, 64
          %149 = vsyncadd %s143, %s148
          %s150 = smul.addr %s18, 64
          %s151 = scalar_lea.hbm %s0, %s150
          %s153 = sshll.u32 %s146, 4
          %s154 = int_to_ptr.vmem [resolvable:$true] %s153
          %156 = dma.hbm_to_vmem [thread:$0]  %s151, 64, %s154, %s143
        $region24: #{tpu_custom_call.1} parent=19 // pred_fallthru
          _
        // Predicated region
        $region25: #{tpu_custom_call.1} parent=19 // pred_check
          %p157 = pneg %p64
        $region26: #{tpu_custom_call.1} parent=19 // pred_check_branch
          %159 = sbr.rel (%p157) target = $region28
        $region27: #{tpu_custom_call.1} parent=19 // pred_region
          %s160 = sand.u32 %s54, 1
          %s161 = scalar_lea.sflag [#allocation6], %s160
          %s162 = sand.u32 %s54, 1
          %s163 = smul.addr %s162, 8
          %s164 = scalar_lea.vmem [#allocation5], %s163
          %s166 = ssub.s32 128, 128
          %167 = vsyncadd %s161, %s166
          %s168 = smul.addr %s18, 128
          %s169 = scalar_lea.hbm %s1, %s168
          %s171 = sshll.u32 %s164, 4
          %s172 = int_to_ptr.vmem [resolvable:$true] %s171
          %174 = dma.hbm_to_vmem [thread:$0]  %s169, 128, %s172, %s161
        $region28: #{tpu_custom_call.1} parent=19 // pred_fallthru
          _
      $region20: #{tpu_custom_call.1} parent=5 // pred_fallthru
        _
      %p175 = scmp.le.s32.totalorder 1, %s18
      %p176 = scmp.lt.s32.totalorder %s18, 3
      %p177 = pnand %p175, %p176
      %p178 = pneg %p177
      // Predicated region
      $region29: #{tpu_custom_call.1} parent=5 // pred_check
        _
      $region30: #{tpu_custom_call.1} parent=5 // pred_check_branch
        %180 = sbr.rel (%p177) target = $region32
      $region31: #{tpu_custom_call.1} parent=5 // pred_region
        %s181 = ssub.s32 %s18, 1
        %s182 = sand.u32 %s31, 1
        %s183 = scalar_lea.sflag [#allocation3], %s182
        %s184 = sand.u32 %s31, 1
        %s185 = smul.addr %s184, 4
        %s186 = scalar_lea.vmem [#allocation2], %s185
        // Predicated region
        $region33: #{tpu_custom_call.1} parent=31 // pred_check
          %p187 = pneg %p44
        $region34: #{tpu_custom_call.1} parent=31 // pred_check_branch
          %189 = sbr.rel (%p187) target = $region36
        $region35: #{tpu_custom_call.1} parent=31 // pred_region
          %190 = dma.done %s183, 64
        $region36: #{tpu_custom_call.1} parent=31 // pred_fallthru
          _
        %s191 = sand.u32 %s57, 1
        %s192 = scalar_lea.sflag [#allocation6], %s191
        %s193 = sand.u32 %s57, 1
        %s194 = smul.addr %s193, 8
        %s195 = scalar_lea.vmem [#allocation5], %s194
        // Predicated region
        $region37: #{tpu_custom_call.1} parent=31 // pred_check
          %p196 = pneg %p70
        $region38: #{tpu_custom_call.1} parent=31 // pred_check_branch
          %198 = sbr.rel (%p196) target = $region40
        $region39: #{tpu_custom_call.1} parent=31 // pred_region
          %199 = dma.done %s192, 128
        $region40: #{tpu_custom_call.1} parent=31 // pred_fallthru
          _
        %s200 = sand.u32 %s31, 1
        %s201 = scalar_lea.sflag [#allocation3], %s200
        %s202 = sand.u32 %s31, 1
        %s203 = smul.addr %s202, 4
        %s204 = scalar_lea.vmem [#allocation2], %s203
        %p205 = pneg %p44
        %p206 = pneg %p41
        %s207 = sand.u32 %s57, 1
        %s208 = scalar_lea.sflag [#allocation6], %s207
        %s209 = sand.u32 %s57, 1
        %s210 = smul.addr %s209, 8
        %s211 = scalar_lea.vmem [#allocation5], %s210
        %p212 = pneg %p70
        %p213 = pneg %p67
        %p214 = pneg %p91
        %p215 = pneg %p88
        %p216 = pneg %p117
        %p217 = pneg %p114
        %s218 = sand.u32 %s104, 1
        %s219 = scalar_lea.sflag [#allocation4], %s218
        %s220 = sand.u32 %s104, 1
        %s221 = smul.addr %s220, 8
        %s222 = scalar_lea.vmem [#allocation7], %s221
        %v224 = vld [vmem:[%s186] sm:$0xf]
        %v225 = vld [vmem:[%s195] sm:$0xff]
        %v226 = vld [vmem:[%s2] sm:$0x3]
        %v229 = vunpack.c.l.s4 1966171168
        %v230 = vunpack.c.0.s8 %v229
        %v231 = vlaneseq
        %v232 = vshrl.u32 %v231, 7
        %v233 = vsub.s32 %v230, %v232
        %v234 = vrot.slane %v226, %v233
        %v235 = vcombine.high %v234, %v234
        %v236 = vunpack.i.l.s16 %v234
        %v237 = vunpack.i.h.s16 %v234
        %v238 = vunpack.i.l.s16 %v235
        %v239 = vunpack.i.h.s16 %v235
        %v240 = vpack.i.b16 %v236, %v236
        %v241 = vpack.i.b16 %v237, %v237
        %v242 = vpack.i.b16 %v238, %v238
        %v243 = vpack.i.b16 %v239, %v239
        %v244 = vlaneseq
        %v245 = vshrl.u32 %v244, 7
        %v246 = vsub.s32 0, %v245
        %v247 = vrot.slane %v240, %v246
        %v248 = vlaneseq
        %v249 = vshrl.u32 %v248, 7
        %v250 = vsub.s32 0, %v249
        %v251 = vrot.slane %v241, %v250
        %v252 = vlaneseq
        %v253 = vshrl.u32 %v252, 7
        %v254 = vsub.s32 0, %v253
        %v255 = vrot.slane %v242, %v254
        %v256 = vlaneseq
        %v257 = vshrl.u32 %v256, 7
        %v258 = vsub.s32 0, %v257
        %v259 = vrot.slane %v243, %v258
        %v261 = vpack.i.b16 %v247, %v247
        %v263 = vlaneseq
        %v264 = vshrl.u32 %v263, 7
        %v265 = vsub.s32 0, %v264
        %v266 = vrot.slane %v261, %v265
        %v268 = vpack.i.b16 %v251, %v251
        %v270 = vlaneseq
        %v271 = vshrl.u32 %v270, 7
        %v272 = vsub.s32 0, %v271
        %v273 = vrot.slane %v268, %v272
        %v275 = vpack.i.b16 %v255, %v255
        %v277 = vlaneseq
        %v278 = vshrl.u32 %v277, 7
        %v279 = vsub.s32 0, %v278
        %v280 = vrot.slane %v275, %v279
        %v282 = vpack.i.b16 %v259, %v259
        %v284 = vlaneseq
        %v285 = vshrl.u32 %v284, 7
        %v286 = vsub.s32 0, %v285
        %v287 = vrot.slane %v282, %v286
        %v288 = vmul.bf16 %v224, %v266
        %v289 = vmul.bf16 %v224, %v273
        %v290 = vmul.bf16 %v224, %v280
        %v291 = vmul.bf16 %v224, %v287
        %v296 = vunpack.c.l.b16 %v288
        %v297 = vunpack.c.l.b16 %v289
        %v298 = vunpack.c.l.b16 %v290
        %v299 = vunpack.c.l.b16 %v291
        %v300 = vpack.c.b16 %v297, %v296
        %v301 = vpack.c.b16 %v299, %v298
        %vm302 = vcmask 261120
        %v304 = vsel %vm302, %v300, 0
        %v307 = vsel %vm302, %v301, 0
        %v310 = vsel %vm302, %v224, 0
        %312 = vmatprep.subr.bf16.mxu0 0
        %313 = vmatpush1.bf16.xpose.msra.mxu0 %v310
        %314 = vmatprep.subr.bf16.mxu0 0
        %315 = vmatpush1.bf16.xpose.msra.mxu0 0
        %316 = vmatprep.subr.bf16.mxu0 0
        %317 = vmatpush1.bf16.xpose.msra.mxu0 0
        %318 = vmatprep.subr.bf16.mxu0 0
        %319 = vmatpush1.bf16.xpose.msra.mxu0 0
        %320 = vmatprep.subr.bf16.mxu0 0
        %321 = vmatpush1.bf16.xpose.msra.mxu0 0
        %322 = vmatprep.subr.bf16.mxu0 0
        %323 = vmatpush1.bf16.xpose.msra.mxu0 0
        %324 = vmatprep.subr.bf16.mxu0 0
        %325 = vmatpush1.bf16.xpose.msra.mxu0 0
        %326 = vmatprep.subr.bf16.mxu0 0
        %327 = vmatpush1.bf16.xpose.msra.mxu0 0
        %328 = vmatprep.subr.bf16.mxu0 0
        %329 = vmatpush1.bf16.xpose.msra.mxu0 0
        %330 = vmatprep.subr.bf16.mxu0 0
        %331 = vmatpush1.bf16.xpose.msra.mxu0 0
        %332 = vmatprep.subr.bf16.mxu0 0
        %333 = vmatpush1.bf16.xpose.msra.mxu0 0
        %334 = vmatprep.subr.bf16.mxu0 0
        %335 = vmatpush1.bf16.xpose.msra.mxu0 0
        %336 = vmatprep.subr.bf16.mxu0 0
        %337 = vmatpush1.bf16.xpose.msra.mxu0 0
        %338 = vmatprep.subr.bf16.mxu0 0
        %339 = vmatpush1.bf16.xpose.msra.mxu0 0
        %340 = vmatprep.subr.bf16.mxu0 0
        %341 = vmatpush1.bf16.xpose.msra.mxu0 0
        %342 = vmatprep.subr.bf16.mxu0 0
        %343 = vmatpush1.bf16.xpose.msra.mxu0 0
        %344 = vmatprep.mubr.bf16.mxu0 0
        %345 = vmatmul.mubr.bf16.gmra.mrb[0].mxu0 %v304
        %v346 = vpop.f32.mrb[0].mxu0
        %v347 = vadd.f32 0.0, %v346
        %v348 = vpop.f32.mrb[0].mxu0
        %v349 = vpop.f32.mrb[0].mxu0
        %v350 = vadd.f32 0.0, %v349
        %v351 = vpop.f32.mrb[0].mxu0
        %352 = vmatprep.mubr.bf16.mxu0 0
        %353 = vmatmul.mubr.bf16.gmra.mrb[0].mxu0 %v307
        %v354 = vpop.f32.mrb[0].mxu0
        %v355 = vadd.f32 0.0, %v354
        %v356 = vpop.f32.mrb[0].mxu0
        %v357 = vpop.f32.mrb[0].mxu0
        %v358 = vadd.f32 0.0, %v357
        %v359 = vpop.f32.mrb[0].mxu0
        %360 = vdwg.mxu0
        %vm361 = vcmp.eq.s32.totalorder %v225, 1
        %v362 = vsel %vm361, %v347, 0.0
        %vm363 = vcmp.eq.s32.totalorder %v225, 2
        %v364 = vsel %vm363, %v350, %v362
        %vm365 = vcmp.eq.s32.totalorder %v225, 3
        %v366 = vsel %vm365, %v355, %v364
        %vm367 = vcmp.eq.s32.totalorder %v225, 4
        %v368 = vsel %vm367, %v358, %v366
        %vm369 = vcmp.gt.f32.partialorder %v368, 0.0
        %v370 = vmul.f32 %v368, 0.2
        %v371 = vsel %vm369, %v368, %v370
        %vm372 = vcmp.ge.s32.totalorder %v225, 1
        %vm373 = vcmp.le.s32.totalorder %v225, 4
        %vm374 = vmand %vm372, %vm373
        %v375 = vsel %vm374, %v371, -9e+15
        %vm376 = vcmask 64512
        %v377 = vsel %vm376, %v375, -inf
        %378 = vmax.xlane.f32.xlu0 %v377
        %v379 = vpop.xlane.xlu0 %378
        %v380 = vsub.f32 %v375, %v379
        %v381 = vmul.f32 %v380, 1.442695
        %v382 = vpow.pop %v381
        %v383 = vsel %vm376, %v382, 0.0
        %384 = vadd.xlane.f32.xlu0 %v383
        %v385 = vpop.xlane.xlu0 %384
        %v386 = vrcp.pop %v385
        %v387 = vmul.f32 %v382, %v386
        %v388 = vpack.c.bf16 %v387, %v387
        %v390 = vsel %vm376, %v388, 0
        %vm392 = vcmask 1043456
        %v393 = vsel %vm392, %v224, 0
        %395 = vmatprep.subr.bf16.mxu0 0
        %396 = vmatpush1.bf16.msra.mxu0 %v393
        %397 = vmatprep.subr.bf16.mxu0 0
        %398 = vmatpush1.bf16.msra.mxu0 0
        %399 = vmatprep.subr.bf16.mxu0 0
        %400 = vmatpush1.bf16.msra.mxu0 0
        %401 = vmatprep.subr.bf16.mxu0 0
        %402 = vmatpush1.bf16.msra.mxu0 0
        %403 = vmatprep.subr.bf16.mxu0 0
        %404 = vmatpush1.bf16.msra.mxu0 0
        %405 = vmatprep.subr.bf16.mxu0 0
        %406 = vmatpush1.bf16.msra.mxu0 0
        %407 = vmatprep.subr.bf16.mxu0 0
        %408 = vmatpush1.bf16.msra.mxu0 0
        %409 = vmatprep.subr.bf16.mxu0 0
        %410 = vmatpush1.bf16.msra.mxu0 0
        %411 = vmatprep.subr.bf16.mxu0 0
        %412 = vmatpush1.bf16.msra.mxu0 0
        %413 = vmatprep.subr.bf16.mxu0 0
        %414 = vmatpush1.bf16.msra.mxu0 0
        %415 = vmatprep.subr.bf16.mxu0 0
        %416 = vmatpush1.bf16.msra.mxu0 0
        %417 = vmatprep.subr.bf16.mxu0 0
        %418 = vmatpush1.bf16.msra.mxu0 0
        %419 = vmatprep.subr.bf16.mxu0 0
        %420 = vmatpush1.bf16.msra.mxu0 0
        %421 = vmatprep.subr.bf16.mxu0 0
        %422 = vmatpush1.bf16.msra.mxu0 0
        %423 = vmatprep.subr.bf16.mxu0 0
        %424 = vmatpush1.bf16.msra.mxu0 0
        %425 = vmatprep.subr.bf16.mxu0 0
        %426 = vmatpush1.bf16.msra.mxu0 0
        %427 = vmatprep.mubr.bf16.mxu0 0
        %428 = vmatmul.mubr.bf16.gmra.mrb[0].mxu0 %v390
        %v429 = vpop.f32.mrb[0].mxu0
        %v430 = vadd.f32 0.0, %v429
        %v431 = vpop.f32.mrb[0].mxu0
        %v432 = vpop.f32.mrb[0].mxu0
        %v433 = vpop.f32.mrb[0].mxu0
        %434 = vdwg.mxu0
        %435 = vst.msk [vmem:[%s222] sm:$0xff] %vm302, %v430
        %s436 = sand.u32 %s104, 1
        %s437 = scalar_lea.sflag [#allocation4], %s436
        %s438 = sand.u32 %s104, 1
        %s439 = smul.addr %s438, 8
        %s440 = scalar_lea.vmem [#allocation7], %s439
        // Predicated region
        $region41: #{tpu_custom_call.1} parent=31 // pred_check
          %p441 = pneg %p114
        $region42: #{tpu_custom_call.1} parent=31 // pred_check_branch
          %443 = sbr.rel (%p441) target = $region44
        $region43: #{tpu_custom_call.1} parent=31 // pred_region
          %s445 = ssub.s32 128, 128
          %446 = vsyncadd %s437, %s445
          %s447 = smul.addr %s23, 128
          %s448 = scalar_lea.hbm %s3, %s447
          %s450 = sshll.u32 %s440, 4
          %s451 = int_to_ptr.vmem [resolvable:$true] %s450
          %453 = dma.vmem_to_hbm [thread:$0]  %s451, 128, %s448, %s437
        $region44: #{tpu_custom_call.1} parent=31 // pred_fallthru
          _
      $region32: #{tpu_custom_call.1} parent=5 // pred_fallthru
        _
      %p454 = scmp.le.s32.totalorder 2, %s18
      // Predicated region
      $region45: #{tpu_custom_call.1} parent=5 // pred_check
        %p455 = pneg %p454
      $region46: #{tpu_custom_call.1} parent=5 // pred_check_branch
        %457 = sbr.rel (%p455) target = $region48
      $region47: #{tpu_custom_call.1} parent=5 // pred_region
        %s458 = ssub.s32 %s18, 2
        // Predicated region
        $region49: #{tpu_custom_call.1} parent=47 // pred_check
          %p459 = pneg %p120
        $region50: #{tpu_custom_call.1} parent=47 // pred_check_branch
          %461 = sbr.rel (%p459) target = $region52
        $region51: #{tpu_custom_call.1} parent=47 // pred_region
          %s462 = sand.u32 %s105, 1
          %s463 = scalar_lea.sflag [#allocation4], %s462
          %s464 = sand.u32 %s105, 1
          %s465 = smul.addr %s464, 8
          %s466 = scalar_lea.vmem [#allocation7], %s465
          %467 = dma.done %s463, 128
        $region52: #{tpu_custom_call.1} parent=47 // pred_fallthru
          _
      $region48: #{tpu_custom_call.1} parent=5 // pred_fallthru
        _
    $region6: #{tpu_custom_call.1} parent=1 // loop_footer
      %s22 = sadd.s32 1, %s18
    $region7: #{tpu_custom_call.1} parent=1 // loop_footer_branch
      %17 = sbr.rel target = $region3
    $region8: #{tpu_custom_call.1} parent=1 // loop_exit
      _
    %468 = vsyncpa [#allocation3], 1
    %s469 = scalar_lea.sflag [#allocation3], 1
    %470 = vsyncpa %s469, 1
    %471 = vsyncpa [#allocation6], 1
    %s472 = scalar_lea.sflag [#allocation6], 1
    %473 = vsyncpa %s472, 1
    %474 = vsyncpa [#allocation4], 1
    %s475 = scalar_lea.sflag [#allocation4], 1
    %476 = vsyncpa %s475, 1

</llo_original>
